<compile_context>
chip_gen: v6e
topology: v6e:2x2x1
jax: 0.10.0
libtpu: 0.0.40
codegen_flags: <defaults>
</compile_context>

<pallas_src>
import functools

import jax
import jax.numpy as jnp
from jax.experimental import pallas as pl
from jax.experimental.pallas import tpu as pltpu

EPS = 1e-5
_BLOCK_BUDGET_BYTES = 6 * 1024 * 1024   # per x block; ~4 live blocks (dbl-buffered in+out)
_VMEM_LIMIT_BYTES = 48 * 1024 * 1024    # explicit scoped-VMEM limit (safe on v5e/v6e/v7x)
_C_UNIT = 8                              # sublane granularity
_S_UNIT = 128                            # lane granularity


# ---------------------------------------------------------------------------
# Tile-size helpers (host-side, static shapes only).
# ---------------------------------------------------------------------------
def _divisor_tile(dim, unit, max_tile):
    """Largest multiple of `unit` that divides `dim` and is <= max_tile (0 if none)."""
    best = 0
    hi = min(dim, max_tile)
    t = unit
    while t <= hi:
        if dim % t == 0:
            best = t
        t += unit
    return best


def _divisor_le(n, cap):
    """Largest divisor of n that is <= cap (at least 1)."""
    best = 1
    for d in range(1, min(n, cap) + 1):
        if n % d == 0:
            best = d
    return best


# ---------------------------------------------------------------------------
# Kernels.
# ---------------------------------------------------------------------------
def _bn_fused_kernel(x_ref, gamma_ref, beta_ref, o_ref, *, eps):
    """Single-pass BN: the whole (N, c_tile, S) slab is resident in VMEM."""
    x = x_ref[...].astype(jnp.float32)
    inv_count = 1.0 / (x.shape[0] * x.shape[2])          # static N * H*W
    # Lane (spatial) reduce via XLU, then fold the batch axis.
    s = jnp.sum(jnp.sum(x, axis=2, keepdims=True), axis=0)        # (c_tile, 1)
    ss = jnp.sum(jnp.sum(x * x, axis=2, keepdims=True), axis=0)   # (c_tile, 1)
    mean = s * inv_count
    # TODO(synk): E[x^2]-mean^2 is cancellation-prone when |mean| >> std; a
    # centered second reduction over the resident slab would be more robust.
    var = jnp.maximum(ss * inv_count - mean * mean, 0.0)          # biased variance
    scale = gamma_ref[...] * jax.lax.rsqrt(var + eps)             # (c_tile, 1)
    shift = beta_ref[...] - mean * scale
    o_ref[...] = (x * scale[None, :, :] + shift[None, :, :]).astype(o_ref.dtype)


def _bn_stats_kernel(x_ref, sum_ref, sq_ref):
    """Fallback pass 1: accumulate per-channel sum / sumsq over (n, s) grid axes."""
    # x_ref: (n_tile, c_tile, s_tile); sum_ref / sq_ref: (c_tile, 1) f32 accumulators.
    @pl.when((pl.program_id(1) == 0) & (pl.program_id(2) == 0))
    def _():
        sum_ref[...] = jnp.zeros_like(sum_ref)
        sq_ref[...] = jnp.zeros_like(sq_ref)

    x = x_ref[...].astype(jnp.float32)
    sum_ref[...] += jnp.sum(jnp.sum(x, axis=2, keepdims=True), axis=0)
    sq_ref[...] += jnp.sum(jnp.sum(x * x, axis=2, keepdims=True), axis=0)


def _bn_norm_kernel(x_ref, scale_ref, shift_ref, o_ref):
    """Fallback pass 2: y = x * scale + shift (per-element: 1 mul + 1 add)."""
    x = x_ref[...].astype(jnp.float32)
    scale = scale_ref[...][None, :, :]   # (1, c_tile, 1)
    shift = shift_ref[...][None, :, :]
    o_ref[...] = (x * scale + shift).astype(o_ref.dtype)


# ---------------------------------------------------------------------------
# Wrapper.
# ---------------------------------------------------------------------------
def batchnorm2d(x, gamma, beta, eps=EPS, block_budget_bytes=_BLOCK_BUDGET_BYTES):
    """Training-mode BatchNorm2d forward. x: (N, C, H, W); gamma, beta: (C,)."""
    N, C, H, W = x.shape
    S = H * W
    x3 = x.reshape(N, C, S)              # free view: no transpose, no extra HBM pass
    itemsize = jnp.dtype(x.dtype).itemsize
    gamma_c = gamma.reshape(C, 1).astype(jnp.float32)
    beta_c = beta.reshape(C, 1).astype(jnp.float32)

    # Minimum legal channel tile: a multiple of 8 (sublanes) or the full C extent.
    min_c = _C_UNIT if (C % _C_UNIT == 0 and C >= _C_UNIT) else C

    # ---------------- Fused single-pass path (1 read + 1 write of x) --------
    if N * min_c * S * itemsize <= block_budget_bytes:
        if min_c == C:
            c_tile = C
        else:
            max_c = block_budget_bytes // max(1, N * S * itemsize)
            # Keep >= 2 channel blocks when C permits so v7x's 2 TCs both get work.
            par_cap = C // 2 if C >= 2 * _C_UNIT else C
            c_tile = _divisor_tile(C, _C_UNIT, min(max_c, par_cap)) or min_c

        x_spec = pl.BlockSpec((N, c_tile, S), lambda c: (0, c, 0))
        ch_spec = pl.BlockSpec((c_tile, 1), lambda c: (c, 0))

        y3 = pl.pallas_call(
            functools.partial(_bn_fused_kernel, eps=eps),
            out_shape=jax.ShapeDtypeStruct((N, C, S), x.dtype),
            grid_spec=pltpu.PrefetchScalarGridSpec(
                num_scalar_prefetch=0,
                grid=(C // c_tile,),
                in_specs=[x_spec, ch_spec, ch_spec],
                out_specs=x_spec,
            ),
            compiler_params=pltpu.CompilerParams(
                dimension_semantics=("parallel",),
                vmem_limit_bytes=_VMEM_LIMIT_BYTES),
        )(x3, gamma_c, beta_c)
        return y3.reshape(N, C, H, W)

    # ---------------- Two-pass tiled fallback (slab too large for VMEM) -----
    # Tile sizes: lane-dense spatial tile first, then batch tile, all within budget.
    c_tile = min_c
    max_s = max(_S_UNIT, block_budget_bytes // max(1, c_tile * itemsize))
    s_tile = _divisor_tile(S, _S_UNIT, max_s) or S
    n_tile = _divisor_le(N, max(1, block_budget_bytes // max(1, c_tile * s_tile * itemsize)))
    if n_tile == N and min_c == _C_UNIT:
        # Budget left over: grow the channel tile (keep >= 2 blocks when possible).
        max_c = block_budget_bytes // max(1, N * s_tile * itemsize)
        par_cap = C // 2 if C >= 2 * _C_UNIT else C
        c_tile = max(c_tile, _divisor_tile(C, _C_UNIT, min(max_c, par_cap)))

    grid = (C // c_tile, N // n_tile, S // s_tile)   # reduction axes (n, s) last
    x_spec = pl.BlockSpec((n_tile, c_tile, s_tile), lambda c, n, s: (n, c, s))
    ch_spec = pl.BlockSpec((c_tile, 1), lambda c, n, s: (c, 0))

    # Pass 1: per-channel sum and sum-of-squares (f32 accumulators, resident
    # in VMEM across the (n, s) reduction axes).
    sum_c, sq_c = pl.pallas_call(
        _bn_stats_kernel,
        out_shape=(jax.ShapeDtypeStruct((C, 1), jnp.float32),
                   jax.ShapeDtypeStruct((C, 1), jnp.float32)),
        grid_spec=pltpu.PrefetchScalarGridSpec(
            num_scalar_prefetch=0,
            grid=grid,
            in_specs=[x_spec],
            out_specs=[ch_spec, ch_spec],
        ),
        compiler_params=pltpu.CompilerParams(
            dimension_semantics=("parallel", "arbitrary", "arbitrary"),
            vmem_limit_bytes=_VMEM_LIMIT_BYTES),
    )(x3)

    # Tiny per-channel finalization (plain JAX, (C,)-sized).
    inv_count = 1.0 / float(N * S)
    mean = sum_c * inv_count
    var = jnp.maximum(sq_c * inv_count - mean * mean, 0.0)   # biased variance
    scale = gamma_c * jax.lax.rsqrt(var + eps)
    shift = beta_c - mean * scale

    # Pass 2: y = x * scale + shift.
    y3 = pl.pallas_call(
        _bn_norm_kernel,
        out_shape=jax.ShapeDtypeStruct((N, C, S), x.dtype),
        grid_spec=pltpu.PrefetchScalarGridSpec(
            num_scalar_prefetch=0,
            grid=grid,
            in_specs=[x_spec, ch_spec, ch_spec],
            out_specs=x_spec,
        ),
        compiler_params=pltpu.CompilerParams(
            dimension_semantics=("parallel", "parallel", "parallel"),
            vmem_limit_bytes=_VMEM_LIMIT_BYTES),
    )(x3, scale, shift)

    return y3.reshape(N, C, H, W)


# ---------------------------------------------------------------------------
# Self-test.
# ---------------------------------------------------------------------------
def _reference(x, gamma, beta, eps=EPS):
    C = x.shape[1]
    mean = jnp.mean(x, axis=(0, 2, 3), keepdims=True)
    var = jnp.mean((x - mean) ** 2, axis=(0, 2, 3), keepdims=True)
    return (x - mean) * jax.lax.rsqrt(var + eps) * gamma.reshape(1, C, 1, 1) \
        + beta.reshape(1, C, 1, 1)


if __name__ == "__main__":
    key = jax.random.PRNGKey(0)
    N, C, H, W = 2, 4, 16, 16
    x = jax.random.normal(key, (N, C, H, W), dtype=jnp.float32)

    # nn.BatchNorm2d default init: weight = 1, bias = 0.
    gamma = jnp.ones((C,), dtype=jnp.float32)
    beta = jnp.zeros((C,), dtype=jnp.float32)

    # Fused single-pass path (the common case).
    bn = jax.jit(batchnorm2d)
    out = jax.block_until_ready(bn(x, gamma, beta))
    ref = _reference(x, gamma, beta)
    assert jnp.allclose(out, ref, atol=1e-4, rtol=1e-4), \
        float(jnp.max(jnp.abs(out - ref)))

    # Also exercise the two-pass tiled fallback by forcing a tiny block budget.
    C2 = 8
    x2 = jax.random.normal(jax.random.PRNGKey(1), (2, C2, 16, 16), dtype=jnp.float32)
    gamma2 = jnp.linspace(0.5, 1.5, C2, dtype=jnp.float32)
    beta2 = jnp.linspace(-0.2, 0.2, C2, dtype=jnp.float32)
    bn2 = jax.jit(functools.partial(batchnorm2d, block_budget_bytes=1024))
    out2 = jax.block_until_ready(bn2(x2, gamma2, beta2))
    ref2 = _reference(x2, gamma2, beta2)
    assert jnp.allclose(out2, ref2, atol=1e-4, rtol=1e-4), \
        float(jnp.max(jnp.abs(out2 - ref2)))

    print("KERNEL_OK")
</pallas_src>

<mosaic_0001>
module attributes {stable_mosaic.version = 11 : i64} {
  func.func @_bn_fused_kernel(%arg0: i32, %arg1: memref<2x4x256xf32, #tpu.memory_space<vmem>>, %arg2: memref<4x1xf32, #tpu.memory_space<vmem>>, %arg3: memref<4x1xf32, #tpu.memory_space<vmem>>, %arg4: memref<2x4x256xf32, #tpu.memory_space<vmem>>) attributes {dimension_semantics = [#tpu.dimension_semantics<parallel>], iteration_bounds = array<i64: 1>, scalar_prefetch = 0 : i64, scratch_operands = 0 : i64, tpu.core_type = #tpu.core_type<tc>, window_params = [{transform_indices = @transform_0, window_bounds = array<i64: 2, 4, 256>}, {transform_indices = @transform_1, window_bounds = array<i64: 4, 1>}, {transform_indices = @transform_2, window_bounds = array<i64: 4, 1>}, {transform_indices = @transform_3, window_bounds = array<i64: 2, 4, 256>}]} {
    %c0 = arith.constant 0 : index
    %c0_0 = arith.constant 0 : index
    %c0_1 = arith.constant 0 : index
    %0 = vector.load %arg1[%c0, %c0_0, %c0_1] : memref<2x4x256xf32, #tpu.memory_space<vmem>>, vector<2x4x256xf32>
    %cst = arith.constant dense<0.000000e+00> : vector<2x4xf32>
    %1 = vector.multi_reduction <add>, %0, %cst [2] : vector<2x4x256xf32> to vector<2x4xf32>
    %2 = vector.shape_cast %1 : vector<2x4xf32> to vector<2x4x1xf32>
    %cst_2 = arith.constant dense<0.000000e+00> : vector<4x1xf32>
    %3 = vector.multi_reduction <add>, %2, %cst_2 [0] : vector<2x4x1xf32> to vector<4x1xf32>
    %4 = arith.mulf %0, %0 : vector<2x4x256xf32>
    %cst_3 = arith.constant dense<0.000000e+00> : vector<2x4xf32>
    %5 = vector.multi_reduction <add>, %4, %cst_3 [2] : vector<2x4x256xf32> to vector<2x4xf32>
    %6 = vector.shape_cast %5 : vector<2x4xf32> to vector<2x4x1xf32>
    %cst_4 = arith.constant dense<0.000000e+00> : vector<4x1xf32>
    %7 = vector.multi_reduction <add>, %6, %cst_4 [0] : vector<2x4x1xf32> to vector<4x1xf32>
    %cst_5 = arith.constant 0.001953125 : f32
    %8 = vector.broadcast %cst_5 : f32 to vector<4x1xf32>
    %9 = arith.mulf %3, %8 : vector<4x1xf32>
    %cst_6 = arith.constant 0.001953125 : f32
    %10 = vector.broadcast %cst_6 : f32 to vector<4x1xf32>
    %11 = arith.mulf %7, %10 : vector<4x1xf32>
    %12 = arith.mulf %9, %9 : vector<4x1xf32>
    %13 = arith.subf %11, %12 : vector<4x1xf32>
    %cst_7 = arith.constant 0.000000e+00 : f32
    %14 = vector.broadcast %cst_7 : f32 to vector<4x1xf32>
    %15 = arith.maximumf %13, %14 : vector<4x1xf32>
    %c0_8 = arith.constant 0 : index
    %c0_9 = arith.constant 0 : index
    %16 = vector.load %arg2[%c0_8, %c0_9] : memref<4x1xf32, #tpu.memory_space<vmem>>, vector<4x1xf32>
    %cst_10 = arith.constant 9.99999974E-6 : f32
    %17 = vector.broadcast %cst_10 : f32 to vector<4x1xf32>
    %18 = arith.addf %15, %17 : vector<4x1xf32>
    %19 = math.rsqrt %18 : vector<4x1xf32>
    %20 = arith.mulf %16, %19 : vector<4x1xf32>
    %c0_11 = arith.constant 0 : index
    %c0_12 = arith.constant 0 : index
    %21 = vector.load %arg3[%c0_11, %c0_12] : memref<4x1xf32, #tpu.memory_space<vmem>>, vector<4x1xf32>
    %22 = arith.mulf %9, %20 : vector<4x1xf32>
    %23 = arith.subf %21, %22 : vector<4x1xf32>
    %24 = vector.shape_cast %20 : vector<4x1xf32> to vector<1x4x1xf32>
    %25 = vector.broadcast %24 : vector<1x4x1xf32> to vector<2x4x256xf32>
    %26 = arith.mulf %0, %25 : vector<2x4x256xf32>
    %27 = vector.shape_cast %23 : vector<4x1xf32> to vector<1x4x1xf32>
    %28 = vector.broadcast %27 : vector<1x4x1xf32> to vector<2x4x256xf32>
    %29 = arith.addf %26, %28 : vector<2x4x256xf32>
    %c0_13 = arith.constant 0 : index
    %c0_14 = arith.constant 0 : index
    %c0_15 = arith.constant 0 : index
    %30 = vector.load %arg4[%c0_13, %c0_14, %c0_15] : memref<2x4x256xf32, #tpu.memory_space<vmem>>, vector<2x4x256xf32>
    tpu.vector_store %arg4[%c0_13, %c0_14, %c0_15], %29 {strides = array<i32>} : memref<2x4x256xf32, #tpu.memory_space<vmem>>, vector<2x4x256xf32>,
    return
  }
  func.func @transform_0(%arg0: i32) -> (i32, i32, i32) {
    %c0_i32 = arith.constant 0 : i32
    %c0_i32_0 = arith.constant 0 : i32
    %c0_i32_1 = arith.constant 0 : i32
    return %c0_i32, %arg0, %c0_i32_0 : i32, i32, i32
  }
  func.func @transform_1(%arg0: i32) -> (i32, i32) {
    %c0_i32 = arith.constant 0 : i32
    %c0_i32_0 = arith.constant 0 : i32
    return %arg0, %c0_i32 : i32, i32
  }
  func.func @transform_2(%arg0: i32) -> (i32, i32) {
    %c0_i32 = arith.constant 0 : i32
    %c0_i32_0 = arith.constant 0 : i32
    return %arg0, %c0_i32 : i32, i32
  }
  func.func @transform_3(%arg0: i32) -> (i32, i32, i32) {
    %c0_i32 = arith.constant 0 : i32
    %c0_i32_0 = arith.constant 0 : i32
    %c0_i32_1 = arith.constant 0 : i32
    return %c0_i32, %arg0, %c0_i32_0 : i32, i32, i32
  }
}

</mosaic_0001>

<llo_original>
// kernel: batchnorm2d.1
$region0: #{batchnorm2d.1}
  #allocation0 [shape = 'u32[]', space=smem, size = 0x4, offset = 0x4, fixed_abs, tag = 'smem constant byte address 0x4 - core index']
  #allocation1 [shape = 'u32[144,128]{1,0:T(1,128)}', space=vmem, size = 0x12000, scoped, tag = 'internal scratch']
  %s0 = inlined_call_operand.vmem [shape: f32[2,4,256], index: 0, kind: input, shape index: {}]
  %s1 = inlined_call_operand.vmem [shape: f32[4,1], index: 1, kind: input, shape index: {}]
  %s2 = inlined_call_operand.vmem [shape: f32[4,1], index: 2, kind: input, shape index: {}]
  %s3 = inlined_call_operand.vmem [shape: f32[2,4,256], index: 3, kind: output, shape index: {}]
  %s4 = sld [smem:[#allocation0]]
  $region22: #{batchnorm2d.1} parent=0
    _
  %s6 = ssub.s32 1, %s4
  %s7 = scalar_select 0, %s6, %s4
  // Predicated region
  $region2: #{batchnorm2d.1} parent=0 // pred_check
    _
  $region3: #{batchnorm2d.1} parent=0 // pred_check_branch
    %9 = sbr.rel (0) target = $region5
  $region4: #{batchnorm2d.1} parent=0 // pred_region
    _
  $region5: #{batchnorm2d.1} parent=0 // pred_fallthru
    _
  // Predicated region
  $region6: #{batchnorm2d.1} parent=0 // pred_check
    _
  $region7: #{batchnorm2d.1} parent=0 // pred_check_branch
    %11 = sbr.rel (0) target = $region9
  $region8: #{batchnorm2d.1} parent=0 // pred_region
    _
  $region9: #{batchnorm2d.1} parent=0 // pred_fallthru
    _
  // Predicated region
  $region10: #{batchnorm2d.1} parent=0 // pred_check
    _
  $region11: #{batchnorm2d.1} parent=0 // pred_check_branch
    %13 = sbr.rel (0) target = $region13
  $region12: #{batchnorm2d.1} parent=0 // pred_region
    _
  $region13: #{batchnorm2d.1} parent=0 // pred_fallthru
    _
  %v14 = vld [vmem:[%s0] sm:$0xff]
  %v15 = vld [vmem:[%s0 + $0x8] sm:$0xff]
  %v18 = vcombine.high %v14, %v14
  %v19 = vcombine.high %v15, %v15
  %vm22 = vcmask 1043456
  %v23 = vsel %vm22, %v14, 0.0
  %v24 = vsel %vm22, %v18, 0.0
  %v25 = vadd.f32 %v23, %v24
  %26 = vadd.xlane.f32.xlu0 %v25
  %v27 = vpop.xlane.xlu0 %26
  %v28 = vsel %vm22, %v15, 0.0
  %v29 = vsel %vm22, %v19, 0.0
  %v30 = vadd.f32 %v28, %v29
  %31 = vadd.xlane.f32.xlu0 %v30
  %v32 = vpop.xlane.xlu0 %31
  %v33 = vsel %vm22, %v27, 0.0
  %v34 = vsel %vm22, %v32, 0.0
  %v35 = vadd.f32 %v33, %v34
  %v36 = vmul.f32 %v14, %v14
  %v37 = vmul.f32 %v15, %v15
  %v40 = vcombine.high %v36, %v36
  %v41 = vcombine.high %v37, %v37
  %v44 = vsel %vm22, %v36, 0.0
  %v45 = vsel %vm22, %v40, 0.0
  %v46 = vadd.f32 %v44, %v45
  %47 = vadd.xlane.f32.xlu0 %v46
  %v48 = vpop.xlane.xlu0 %47
  %v49 = vsel %vm22, %v37, 0.0
  %v50 = vsel %vm22, %v41, 0.0
  %v51 = vadd.f32 %v49, %v50
  %52 = vadd.xlane.f32.xlu0 %v51
  %v53 = vpop.xlane.xlu0 %52
  %v54 = vsel %vm22, %v48, 0.0
  %v55 = vsel %vm22, %v53, 0.0
  %v56 = vadd.f32 %v54, %v55
  %v57 = vmul.f32 %v35, 0.001953125
  %v58 = vmul.f32 %v56, 0.001953125
  %v59 = vmul.f32 %v57, %v57
  %v60 = vsub.f32 %v58, %v59
  %v61 = vmax.f32 %v60, 0.0
  %v62 = vld [vmem:[%s1] sm:$0xf]
  %v63 = vadd.f32 %v61, 1e-05
  %v64 = vrsqrt.pop %v63
  %v65 = vmul.f32 %v62, %v64
  %v66 = vld [vmem:[%s2] sm:$0xf]
  %v67 = vmul.f32 %v57, %v65
  %v68 = vsub.f32 %v66, %v67
  %70 = vset.pattern.permute.xlu0 0
  %71 = vperm.xlu0 %70, %v65
  %v72 = vpop.permute.xlu0 %71
  %v74 = vunpack.c.l.s4 839922192
  %v75 = vunpack.c.0.s8 %v74
  %v76 = vlaneseq
  %v77 = vshrl.u32 %v76, 7
  %v78 = vsub.s32 %v75, %v77
  %v79 = vrot.slane %v72, %v78
  %v81 = vmul.f32 %v14, %v79
  %v82 = vmul.f32 %v15, %v79
  %84 = vset.pattern.permute.xlu0 0
  %85 = vperm.xlu0 %84, %v68
  %v86 = vpop.permute.xlu0 %85
  %v88 = vunpack.c.l.s4 839922192
  %v89 = vunpack.c.0.s8 %v88
  %v90 = vlaneseq
  %v91 = vshrl.u32 %v90, 7
  %v92 = vsub.s32 %v89, %v91
  %v93 = vrot.slane %v86, %v92
  %v95 = vadd.f32 %v81, %v93
  %v96 = vadd.f32 %v82, %v93
  %97 = vst [vmem:[%s3] sm:$0xff] %v95
  %98 = vst [vmem:[%s3 + $0x8] sm:$0xff] %v96
  // Predicated region
  $region14: #{batchnorm2d.1} parent=0 // pred_check
    _
  $region15: #{batchnorm2d.1} parent=0 // pred_check_branch
    %100 = sbr.rel (0) target = $region17
  $region16: #{batchnorm2d.1} parent=0 // pred_region
    _
  $region17: #{batchnorm2d.1} parent=0 // pred_fallthru
    _
  // Predicated region
  $region18: #{batchnorm2d.1} parent=0 // pred_check
    _
  $region19: #{batchnorm2d.1} parent=0 // pred_check_branch
    %102 = sbr.rel (0) target = $region21
  $region20: #{batchnorm2d.1} parent=0 // pred_region
    _
  $region21: #{batchnorm2d.1} parent=0 // pred_fallthru
    _

</llo_original>
